<compile_context>
chip_gen: v6e
topology: v6e:2x2x1
jax: 0.10.0
libtpu: 0.0.40
codegen_flags: <defaults>
</compile_context>

<pallas_src>
import functools

import jax
import jax.numpy as jnp
from jax.experimental import pallas as pl
from jax.experimental.pallas import tpu as pltpu


def _round_up(n: int, m: int) -> int:
    return ((n + m - 1) // m) * m


def _pad_cols(a, cols):
    return jnp.pad(a, ((0, 0), (0, cols - a.shape[1])))


# ----------------------------------------------------------------------------
# Kernel: one GRU step + relu
# ----------------------------------------------------------------------------
def gru_step_kernel(x_ref, h_ref, wx_ref, wh_ref, bi_ref, bh_ref,
                    out_ref, hid_ref, *, hidden_size, hidden_pad):
    """x_ref  : (B, D)     f32 input
       h_ref  : (1, B, H)  f32 previous hidden (f32 carry kept exact)
       wx_ref : (D, 3*Hp)  matmul dtype, column groups [r, z, n] (W_ih^T, padded)
       wh_ref : (H, 3*Hp)  matmul dtype, column groups [r, z, n] (W_hh^T, padded)
       bi_ref : (1, 3*Hp)  f32 [b_ir, b_iz, b_in] padded
       bh_ref : (1, 3*Hp)  f32 [b_hr, b_hz, b_hn] padded
       out_ref: (1, B, H)  f32 relu(h_new)
       hid_ref: (1, B, H)  f32 h_new
    """
    H, Hp = hidden_size, hidden_pad

    h_f32 = h_ref[0]                                 # (B, H) f32 carry
    x = x_ref[...].astype(wx_ref.dtype)              # cast to MXU operand dtype
    h = h_f32.astype(wh_ref.dtype)

    # Two small MXU passes, f32 accumulation.  Column groups are lane-aligned
    # (Hp is a multiple of 128).
    gi = jnp.dot(x, wx_ref[...], preferred_element_type=jnp.float32) + bi_ref[...]
    gh = jnp.dot(h, wh_ref[...], preferred_element_type=jnp.float32) + bh_ref[...]

    r = jax.nn.sigmoid(gi[:, 0 * Hp:1 * Hp] + gh[:, 0 * Hp:1 * Hp])
    z = jax.nn.sigmoid(gi[:, 1 * Hp:2 * Hp] + gh[:, 1 * Hp:2 * Hp])
    n = jnp.tanh(gi[:, 2 * Hp:3 * Hp] + r * gh[:, 2 * Hp:3 * Hp])

    z_h = z[:, :H]                                   # lane-prefix slices (offset 0)
    h_new = (1.0 - z_h) * n[:, :H] + z_h * h_f32     # carry uses the f32 hidden

    out_ref[0] = jnp.maximum(h_new, 0.0)
    hid_ref[0] = h_new


# ----------------------------------------------------------------------------
# One-time parameter preparation (hoisted out of the per-call path)
# ----------------------------------------------------------------------------
def prepare_encoder_params(params, input_size, hidden_size,
                           matmul_dtype=jnp.bfloat16):
    """Pre-transpose and pad GRU weights once.

    params: (w_ih (3H, D), w_hh (3H, H), b_ih (3H,), b_hh (3H,)) in PyTorch
            gate order [r, z, n].
    Returns (wx (D, 3*Hp), wh (H, 3*Hp), bi (1, 3*Hp), bh (1, 3*Hp)),
    Hp = round_up(H, 128).  Weights in `matmul_dtype` (bf16 default — native
    MXU dtype on v5e/v6e/v7x); biases stay f32.
    """
    w_ih, w_hh, b_ih, b_hh = params
    H = hidden_size
    Hp = _round_up(H, 128)

    def stack_w(w):   # (3H, in) -> (in, 3Hp), column groups [r, z, n]
        return jnp.concatenate(
            [_pad_cols(w[g * H:(g + 1) * H].T, Hp) for g in range(3)],
            axis=1).astype(matmul_dtype)

    def stack_b(b):   # (3H,) -> (1, 3Hp)
        return jnp.concatenate(
            [_pad_cols(b[g * H:(g + 1) * H][None, :], Hp) for g in range(3)],
            axis=1).astype(jnp.float32)

    return stack_w(w_ih), stack_w(w_hh), stack_b(b_ih), stack_b(b_hh)


# ----------------------------------------------------------------------------
# Forward wrapper (mirrors EncoderRNN.forward)
# ----------------------------------------------------------------------------
def encoder_rnn_forward(inp, hidden, prepped, *, input_size, hidden_size):
    """inp: (..., input_size)-flattenable; hidden: (1, B, hidden_size).

    Returns (output (B, 1, H) relu'd, hidden (1, B, H) not relu'd).
    """
    wx, wh, bi, bh = prepped
    Hp = wx.shape[1] // 3

    x = inp.reshape(-1, input_size)                  # the semantic .view (metadata only)
    B = x.shape[0]
    if hidden.shape != (1, B, hidden_size):
        raise ValueError(
            f"hidden shape {hidden.shape} does not match expected "
            f"(1, {B}, {hidden_size}) derived from input.view(-1, 1, {input_size})")

    x = x.astype(jnp.float32)                        # no-op when already f32
    h = hidden.astype(jnp.float32)

    vmem = pl.BlockSpec(memory_space=pltpu.MemorySpace.VMEM)
    out, hid = pl.pallas_call(
        functools.partial(gru_step_kernel,
                          hidden_size=hidden_size, hidden_pad=Hp),
        out_shape=(jax.ShapeDtypeStruct((1, B, hidden_size), jnp.float32),
                   jax.ShapeDtypeStruct((1, B, hidden_size), jnp.float32)),
        in_specs=[vmem] * 6,
        out_specs=(vmem, vmem),
    )(x, h, wx, wh, bi, bh)

    output = out.reshape(B, 1, hidden_size)          # free bitcast reshape
    return output, hid


# ----------------------------------------------------------------------------
# Init + pure-JAX reference
# ----------------------------------------------------------------------------
def init_gru_params(key, input_size, hidden_size):
    """PyTorch-style uniform(-1/sqrt(H), 1/sqrt(H)) init."""
    k = 1.0 / jnp.sqrt(jnp.float32(hidden_size))
    k1, k2, k3, k4 = jax.random.split(key, 4)
    w_ih = jax.random.uniform(k1, (3 * hidden_size, input_size), jnp.float32, -k, k)
    w_hh = jax.random.uniform(k2, (3 * hidden_size, hidden_size), jnp.float32, -k, k)
    b_ih = jax.random.uniform(k3, (3 * hidden_size,), jnp.float32, -k, k)
    b_hh = jax.random.uniform(k4, (3 * hidden_size,), jnp.float32, -k, k)
    return (w_ih, w_hh, b_ih, b_hh)


def _reference_forward(inp, hidden, params, input_size, hidden_size):
    """Pure-JAX reference of the same GRU step."""
    x = inp.reshape(-1, input_size)
    B = x.shape[0]
    h = hidden.reshape(B, hidden_size)
    w_ih, w_hh, b_ih, b_hh = params
    gi = x @ w_ih.T + b_ih
    gh = h @ w_hh.T + b_hh
    H = hidden_size
    r = jax.nn.sigmoid(gi[:, :H] + gh[:, :H])
    z = jax.nn.sigmoid(gi[:, H:2 * H] + gh[:, H:2 * H])
    n = jnp.tanh(gi[:, 2 * H:] + r * gh[:, 2 * H:])
    h_new = (1.0 - z) * n + z * h
    return jnp.maximum(h_new, 0.0).reshape(B, 1, H), h_new.reshape(1, B, H)


if __name__ == "__main__":
    input_size = 16
    hidden_size = 32

    key = jax.random.PRNGKey(0)
    kp, kx, kh = jax.random.split(key, 3)
    params = init_gru_params(kp, input_size, hidden_size)

    # input (2, 4, 16) -> view(-1, 1, 16) gives batch B = 8, seq_len = 1
    x = jax.random.normal(kx, (2, 4, input_size), jnp.float32)
    B = x.reshape(-1, input_size).shape[0]
    hidden0 = jnp.zeros((1, B, hidden_size), jnp.float32)            # initHidden(B)
    hidden_r = jax.random.normal(kh, (1, B, hidden_size), jnp.float32)

    fwd = jax.jit(functools.partial(
        encoder_rnn_forward, input_size=input_size, hidden_size=hidden_size))

    # --- bf16 MXU operands (default; f32 carry & gate math) ------------------
    prepped_bf16 = prepare_encoder_params(params, input_size, hidden_size)
    for h0 in (hidden0, hidden_r):
        out_ref, h_ref = _reference_forward(x, h0, params, input_size, hidden_size)
        out, h_new = jax.block_until_ready(fwd(x, h0, prepped_bf16))
        assert out.shape == (B, 1, hidden_size)
        assert h_new.shape == (1, B, hidden_size)
        assert jnp.allclose(out, out_ref, atol=5e-2), "bf16 output mismatch"
        assert jnp.allclose(h_new, h_ref, atol=5e-2), "bf16 hidden mismatch"

    # --- f32 MXU path: exact agreement with the reference --------------------
    prepped_f32 = prepare_encoder_params(params, input_size, hidden_size,
                                         matmul_dtype=jnp.float32)
    for h0 in (hidden0, hidden_r):
        out_ref, h_ref = _reference_forward(x, h0, params, input_size, hidden_size)
        out, h_new = jax.block_until_ready(fwd(x, h0, prepped_f32))
        assert jnp.allclose(out, out_ref, atol=1e-5), "f32 output mismatch"
        assert jnp.allclose(h_new, h_ref, atol=1e-5), "f32 hidden mismatch"

    print("KERNEL_OK")
</pallas_src>

<mosaic_0001>
module attributes {stable_mosaic.version = 11 : i64} {
  func.func @gru_step_kernel(%arg0: memref<8x16xf32, #tpu.memory_space<vmem>>, %arg1: memref<1x8x32xf32, #tpu.memory_space<vmem>>, %arg2: memref<16x384xbf16, #tpu.memory_space<vmem>>, %arg3: memref<32x384xbf16, #tpu.memory_space<vmem>>, %arg4: memref<1x384xf32, #tpu.memory_space<vmem>>, %arg5: memref<1x384xf32, #tpu.memory_space<vmem>>, %arg6: memref<1x8x32xf32, #tpu.memory_space<vmem>>, %arg7: memref<1x8x32xf32, #tpu.memory_space<vmem>>) attributes {dimension_semantics = [], scalar_prefetch = 0 : i64, scratch_operands = 0 : i64, tpu.core_type = #tpu.core_type<tc>} {
    %c0 = arith.constant 0 : index
    %c0_0 = arith.constant 0 : index
    %c0_1 = arith.constant 0 : index
    %0 = vector.load %arg1[%c0, %c0_0, %c0_1] : memref<1x8x32xf32, #tpu.memory_space<vmem>>, vector<1x8x32xf32>
    %1 = vector.shape_cast %0 : vector<1x8x32xf32> to vector<8x32xf32>
    %c0_2 = arith.constant 0 : index
    %c0_3 = arith.constant 0 : index
    %2 = vector.load %arg0[%c0_2, %c0_3] : memref<8x16xf32, #tpu.memory_space<vmem>>, vector<8x16xf32>
    %3 = arith.truncf %2 : vector<8x16xf32> to vector<8x16xbf16>
    %4 = arith.truncf %1 : vector<8x32xf32> to vector<8x32xbf16>
    %c0_4 = arith.constant 0 : index
    %c0_5 = arith.constant 0 : index
    %5 = vector.load %arg2[%c0_4, %c0_5] : memref<16x384xbf16, #tpu.memory_space<vmem>>, vector<16x384xbf16>
    %cst = arith.constant dense<0.000000e+00> : vector<8x384xf32>
    %6 = tpu.matmul %3, %5, %cst {dimension_numbers = #tpu.dot_dimension_numbers<[1], [0], [0], [1], [0, 0, 1, 1], [], []>} : vector<8x16xbf16>, vector<16x384xbf16>, vector<8x384xf32> -> vector<8x384xf32>
    %c0_6 = arith.constant 0 : index
    %c0_7 = arith.constant 0 : index
    %7 = vector.load %arg4[%c0_6, %c0_7] : memref<1x384xf32, #tpu.memory_space<vmem>>, vector<1x384xf32>
    %8 = vector.broadcast %7 : vector<1x384xf32> to vector<8x384xf32>
    %9 = arith.addf %6, %8 : vector<8x384xf32>
    %c0_8 = arith.constant 0 : index
    %c0_9 = arith.constant 0 : index
    %10 = vector.load %arg3[%c0_8, %c0_9] : memref<32x384xbf16, #tpu.memory_space<vmem>>, vector<32x384xbf16>
    %cst_10 = arith.constant dense<0.000000e+00> : vector<8x384xf32>
    %11 = tpu.matmul %4, %10, %cst_10 {dimension_numbers = #tpu.dot_dimension_numbers<[1], [0], [0], [1], [0, 0, 1, 1], [], []>} : vector<8x32xbf16>, vector<32x384xbf16>, vector<8x384xf32> -> vector<8x384xf32>
    %c0_11 = arith.constant 0 : index
    %c0_12 = arith.constant 0 : index
    %12 = vector.load %arg5[%c0_11, %c0_12] : memref<1x384xf32, #tpu.memory_space<vmem>>, vector<1x384xf32>
    %13 = vector.broadcast %12 : vector<1x384xf32> to vector<8x384xf32>
    %14 = arith.addf %11, %13 : vector<8x384xf32>
    %15 = vector.extract_strided_slice %9 {offsets = [0, 0], sizes = [8, 128], strides = [1, 1]} : vector<8x384xf32> to vector<8x128xf32>
    %16 = vector.extract_strided_slice %14 {offsets = [0, 0], sizes = [8, 128], strides = [1, 1]} : vector<8x384xf32> to vector<8x128xf32>
    %17 = arith.addf %15, %16 : vector<8x128xf32>
    %18 = arith.negf %17 : vector<8x128xf32>
    %19 = math.exp %18 : vector<8x128xf32>
    %cst_13 = arith.constant 1.000000e+00 : f32
    %20 = vector.broadcast %cst_13 : f32 to vector<8x128xf32>
    %21 = arith.addf %20, %19 : vector<8x128xf32>
    %22 = arith.divf %20, %21 : vector<8x128xf32>
    %23 = vector.extract_strided_slice %9 {offsets = [0, 128], sizes = [8, 128], strides = [1, 1]} : vector<8x384xf32> to vector<8x128xf32>
    %24 = vector.extract_strided_slice %14 {offsets = [0, 128], sizes = [8, 128], strides = [1, 1]} : vector<8x384xf32> to vector<8x128xf32>
    %25 = arith.addf %23, %24 : vector<8x128xf32>
    %26 = arith.negf %25 : vector<8x128xf32>
    %27 = math.exp %26 : vector<8x128xf32>
    %cst_14 = arith.constant 1.000000e+00 : f32
    %28 = vector.broadcast %cst_14 : f32 to vector<8x128xf32>
    %29 = arith.addf %28, %27 : vector<8x128xf32>
    %30 = arith.divf %28, %29 : vector<8x128xf32>
    %31 = vector.extract_strided_slice %9 {offsets = [0, 256], sizes = [8, 128], strides = [1, 1]} : vector<8x384xf32> to vector<8x128xf32>
    %32 = vector.extract_strided_slice %14 {offsets = [0, 256], sizes = [8, 128], strides = [1, 1]} : vector<8x384xf32> to vector<8x128xf32>
    %33 = arith.mulf %22, %32 : vector<8x128xf32>
    %34 = arith.addf %31, %33 : vector<8x128xf32>
    %35 = math.tanh %34 : vector<8x128xf32>
    %36 = vector.extract_strided_slice %30 {offsets = [0, 0], sizes = [8, 32], strides = [1, 1]} : vector<8x128xf32> to vector<8x32xf32>
    %cst_15 = arith.constant 1.000000e+00 : f32
    %37 = vector.broadcast %cst_15 : f32 to vector<8x32xf32>
    %38 = arith.subf %37, %36 : vector<8x32xf32>
    %39 = vector.extract_strided_slice %35 {offsets = [0, 0], sizes = [8, 32], strides = [1, 1]} : vector<8x128xf32> to vector<8x32xf32>
    %40 = arith.mulf %38, %39 : vector<8x32xf32>
    %41 = arith.mulf %36, %1 : vector<8x32xf32>
    %42 = arith.addf %40, %41 : vector<8x32xf32>
    %cst_16 = arith.constant 0.000000e+00 : f32
    %43 = vector.broadcast %cst_16 : f32 to vector<8x32xf32>
    %44 = arith.maximumf %42, %43 : vector<8x32xf32>
    %c0_17 = arith.constant 0 : index
    %c0_18 = arith.constant 0 : index
    %c0_19 = arith.constant 0 : index
    %45 = vector.load %arg6[%c0_17, %c0_18, %c0_19] : memref<1x8x32xf32, #tpu.memory_space<vmem>>, vector<1x8x32xf32>
    %46 = vector.shape_cast %45 : vector<1x8x32xf32> to vector<8x32xf32>
    %47 = vector.shape_cast %44 : vector<8x32xf32> to vector<1x8x32xf32>
    tpu.vector_store %arg6[%c0_17, %c0_18, %c0_19], %47 {strides = array<i32>} : memref<1x8x32xf32, #tpu.memory_space<vmem>>, vector<1x8x32xf32>,
    %c0_20 = arith.constant 0 : index
    %c0_21 = arith.constant 0 : index
    %c0_22 = arith.constant 0 : index
    %48 = vector.load %arg7[%c0_20, %c0_21, %c0_22] : memref<1x8x32xf32, #tpu.memory_space<vmem>>, vector<1x8x32xf32>
    %49 = vector.shape_cast %48 : vector<1x8x32xf32> to vector<8x32xf32>
    %50 = vector.shape_cast %42 : vector<8x32xf32> to vector<1x8x32xf32>
    tpu.vector_store %arg7[%c0_20, %c0_21, %c0_22], %50 {strides = array<i32>} : memref<1x8x32xf32, #tpu.memory_space<vmem>>, vector<1x8x32xf32>,
    return
  }
}

</mosaic_0001>

<llo_original>
// kernel: encoder_rnn_forward.1
$region0: #{encoder_rnn_forward.1}
  #allocation0 [shape = 'u32[]', space=smem, size = 0x4, offset = 0x4, fixed_abs, tag = 'smem constant byte address 0x4 - core index']
  #allocation1 [shape = 'u32[144,128]{1,0:T(1,128)}', space=vmem, size = 0x12000, scoped, tag = 'internal scratch']
  %s0 = inlined_call_operand.hbm [shape: f32[8,16], index: 0, kind: input, shape index: {}]
  %s1 = inlined_call_operand.hbm [shape: f32[1,8,32], index: 1, kind: input, shape index: {}]
  %s2 = inlined_call_operand.hbm [shape: bf16[16,384], index: 2, kind: input, shape index: {}]
  %s3 = inlined_call_operand.hbm [shape: bf16[32,384], index: 3, kind: input, shape index: {}]
  %s4 = inlined_call_operand.vmem [shape: f32[1,384], index: 4, kind: input, shape index: {}]
  %s5 = inlined_call_operand.vmem [shape: f32[1,384], index: 5, kind: input, shape index: {}]
  %s6 = inlined_call_operand.hbm [shape: f32[1,8,32], index: 6, kind: output, shape index: {0}]
  %s7 = inlined_call_operand.hbm [shape: f32[1,8,32], index: 7, kind: output, shape index: {1}]
  %8 = xla_tuple %s6, %s7
  %s9 = sld [smem:[#allocation0]]
  $region58: #{encoder_rnn_forward.1} parent=0
    _
  %s11 = ssub.s32 1, %s9
  %s12 = scalar_select 0, %s11, %s9
  $region1: #{encoder_rnn_forward.1} parent=0
    #allocation2 [shape = 'u8[4096]{0}', space=vmem, size = 0x1000, scoped, tag = 'input window, operand 0, single buffered']
    #allocation3 [shape = 's32[1]{0}', space=sflag, size = 0x4, scoped, tag = 'scoped memory for encoder_rnn_forward.1']
    #allocation4 [shape = 's32[1]{0}', space=sflag, size = 0x4, scoped, tag = 'scoped memory for encoder_rnn_forward.1']
    #allocation5 [shape = 'u8[4096]{0}', space=vmem, size = 0x1000, scoped, tag = 'input window, operand 1, single buffered']
    #allocation6 [shape = 's32[1]{0}', space=sflag, size = 0x4, scoped, tag = 'scoped memory for encoder_rnn_forward.1']
    #allocation7 [shape = 'u8[12288]{0}', space=vmem, size = 0x3000, scoped, tag = 'input window, operand 2, single buffered']
    #allocation8 [shape = 'u8[24576]{0}', space=vmem, size = 0x6000, scoped, tag = 'input window, operand 3, single buffered']
    #allocation9 [shape = 's32[1]{0}', space=sflag, size = 0x4, scoped, tag = 'scoped memory for encoder_rnn_forward.1']
    #allocation10 [shape = 'u8[4096]{0}', space=vmem, size = 0x1000, scoped, tag = 'output window, operand 0, single buffered']
    #allocation11 [shape = 'u8[4096]{0}', space=vmem, size = 0x1000, scoped, tag = 'output window, operand 1, single buffered']
    #allocation12 [shape = 's32[1]{0}', space=sflag, size = 0x4, scoped, tag = 'scoped memory for encoder_rnn_forward.1']
    %13 = vsyncpa [#allocation3], 0
    %14 = vsyncpa [#allocation6], 0
    %15 = vsyncpa [#allocation9], 0
    %16 = vsyncpa [#allocation4], 0
    %17 = vsyncpa [#allocation12], 0
    // Predicated region
    $region2: #{encoder_rnn_forward.1} parent=1 // pred_check
      _
    $region3: #{encoder_rnn_forward.1} parent=1 // pred_check_branch
      %19 = sbr.rel (0) target = $region5
    $region4: #{encoder_rnn_forward.1} parent=1 // pred_region
      %s21 = ssub.s32 128, 128
      %22 = vsyncadd [#allocation3], %s21
      %s24 = sshll.u32 [#allocation2], 4
      %s25 = int_to_ptr.vmem [resolvable:$true] %s24
      %27 = dma.hbm_to_vmem [thread:$0]  %s0, 128, %s25, [#allocation3]
    $region5: #{encoder_rnn_forward.1} parent=1 // pred_fallthru
      _
    // Predicated region
    $region6: #{encoder_rnn_forward.1} parent=1 // pred_check
      _
    $region7: #{encoder_rnn_forward.1} parent=1 // pred_check_branch
      %29 = sbr.rel (0) target = $region9
    $region8: #{encoder_rnn_forward.1} parent=1 // pred_region
      %s31 = ssub.s32 128, 128
      %32 = vsyncadd [#allocation6], %s31
      %s34 = sshll.u32 [#allocation5], 4
      %s35 = int_to_ptr.vmem [resolvable:$true] %s34
      %37 = dma.hbm_to_vmem [thread:$0]  %s1, 128, %s35, [#allocation6]
    $region9: #{encoder_rnn_forward.1} parent=1 // pred_fallthru
      _
    // Predicated region
    $region10: #{encoder_rnn_forward.1} parent=1 // pred_check
      _
    $region11: #{encoder_rnn_forward.1} parent=1 // pred_check_branch
      %39 = sbr.rel (0) target = $region13
    $region12: #{encoder_rnn_forward.1} parent=1 // pred_region
      %s41 = ssub.s32 384, 384
      %42 = vsyncadd [#allocation6], %s41
      %s43 = sshll.u32 [#allocation7], 4
      %s44 = int_to_ptr.vmem [resolvable:$true] %s43
      %49 = dma.hbm_to_vmem [thread:$0]  %s2, 384, %s44, [#allocation6], 192, 192, 12
    $region13: #{encoder_rnn_forward.1} parent=1 // pred_fallthru
      _
    // Predicated region
    $region14: #{encoder_rnn_forward.1} parent=1 // pred_check
      _
    $region15: #{encoder_rnn_forward.1} parent=1 // pred_check_branch
      %51 = sbr.rel (0) target = $region17
    $region16: #{encoder_rnn_forward.1} parent=1 // pred_region
      %s53 = ssub.s32 768, 768
      %54 = vsyncadd [#allocation9], %s53
      %s55 = sshll.u32 [#allocation8], 4
      %s56 = int_to_ptr.vmem [resolvable:$true] %s55
      %61 = dma.hbm_to_vmem [thread:$0]  %s3, 768, %s56, [#allocation9], 192, 192, 12
    $region17: #{encoder_rnn_forward.1} parent=1 // pred_fallthru
      _
    // Predicated region
    $region18: #{encoder_rnn_forward.1} parent=1 // pred_check
      _
    $region19: #{encoder_rnn_forward.1} parent=1 // pred_check_branch
      %63 = sbr.rel (0) target = $region21
    $region20: #{encoder_rnn_forward.1} parent=1 // pred_region
      _
    $region21: #{encoder_rnn_forward.1} parent=1 // pred_fallthru
      _
    // Predicated region
    $region22: #{encoder_rnn_forward.1} parent=1 // pred_check
      _
    $region23: #{encoder_rnn_forward.1} parent=1 // pred_check_branch
      %65 = sbr.rel (0) target = $region25
    $region24: #{encoder_rnn_forward.1} parent=1 // pred_region
      _
    $region25: #{encoder_rnn_forward.1} parent=1 // pred_fallthru
      _
    // Predicated region
    $region26: #{encoder_rnn_forward.1} parent=1 // pred_check
      _
    $region27: #{encoder_rnn_forward.1} parent=1 // pred_check_branch
      %67 = sbr.rel (0) target = $region29
    $region28: #{encoder_rnn_forward.1} parent=1 // pred_region
      %68 = dma.done [#allocation3], 128
    $region29: #{encoder_rnn_forward.1} parent=1 // pred_fallthru
      _
    // Predicated region
    $region30: #{encoder_rnn_forward.1} parent=1 // pred_check
      _
    $region31: #{encoder_rnn_forward.1} parent=1 // pred_check_branch
      %70 = sbr.rel (0) target = $region33
    $region32: #{encoder_rnn_forward.1} parent=1 // pred_region
      %71 = dma.done [#allocation6], 128
    $region33: #{encoder_rnn_forward.1} parent=1 // pred_fallthru
      _
    // Predicated region
    $region34: #{encoder_rnn_forward.1} parent=1 // pred_check
      _
    $region35: #{encoder_rnn_forward.1} parent=1 // pred_check_branch
      %73 = sbr.rel (0) target = $region37
    $region36: #{encoder_rnn_forward.1} parent=1 // pred_region
      %74 = dma.done [#allocation6], 384
    $region37: #{encoder_rnn_forward.1} parent=1 // pred_fallthru
      _
    // Predicated region
    $region38: #{encoder_rnn_forward.1} parent=1 // pred_check
      _
    $region39: #{encoder_rnn_forward.1} parent=1 // pred_check_branch
      %76 = sbr.rel (0) target = $region41
    $region40: #{encoder_rnn_forward.1} parent=1 // pred_region
      %77 = dma.done [#allocation9], 768
    $region41: #{encoder_rnn_forward.1} parent=1 // pred_fallthru
      _
    %v79 = vld [vmem:[#allocation5] sm:$0xff]
    %v80 = vld [vmem:[#allocation2] sm:$0xff]
    %v81 = vpack.c.bf16 %v80, %v80
    %v82 = vpack.c.bf16 %v79, %v79
    %v83 = vld [vmem:[#allocation7] sm:$0xff]
    %v84 = vld [vmem:[#allocation7 + $0x8] sm:$0xf]
    %v85 = vld [vmem:[#allocation7 + $0xc] sm:$0xff]
    %v86 = vld [vmem:[#allocation7 + $0x14] sm:$0xf]
    %v87 = vld [vmem:[%s4] sm:$0x7]
    %v89 = vlaneseq
    %v90 = vshrl.u32 %v89, 7
    %v91 = vsub.s32 0, %v90
    %v92 = vrot.slane %v87, %v91
    %v93 = vlaneseq
    %v94 = vshrl.u32 %v93, 7
    %v95 = vsub.s32 1, %v94
    %v96 = vrot.slane %v87, %v95
    %v97 = vlaneseq
    %v98 = vshrl.u32 %v97, 7
    %v99 = vsub.s32 2, %v98
    %v100 = vrot.slane %v87, %v99
    %v108 = vunpack.c.l.b16 %v83
    %v109 = vunpack.c.h.b16 %v83
    %v110 = vunpack.c.l.b16 %v84
    %v111 = vunpack.c.l.b16 %v85
    %v112 = vunpack.c.h.b16 %v85
    %v113 = vunpack.c.l.b16 %v86
    %v114 = vpack.c.b16 %v111, %v108
    %v115 = vpack.c.b16 %v112, %v109
    %v116 = vpack.c.b16 %v113, %v110
    %vm120 = vcmask 130048
    %v122 = vsel %vm120, %v81, 0
    %124 = vmatprep.subr.bf16.mxu0 0
    %125 = vmatpush1.bf16.msra.mxu0 0
    %126 = vmatprep.subr.bf16.mxu0 0
    %127 = vmatpush1.bf16.msra.mxu0 0
    %128 = vmatprep.subr.bf16.mxu0 0
    %129 = vmatpush1.bf16.msra.mxu0 0
    %130 = vmatprep.subr.bf16.mxu0 0
    %131 = vmatpush1.bf16.msra.mxu0 0
    %132 = vmatprep.subr.bf16.mxu0 0
    %133 = vmatpush1.bf16.msra.mxu0 0
    %134 = vmatprep.subr.bf16.mxu0 0
    %135 = vmatpush1.bf16.msra.mxu0 0
    %136 = vmatprep.subr.bf16.mxu0 0
    %137 = vmatpush1.bf16.msra.mxu0 0
    %138 = vmatprep.subr.bf16.mxu0 %v115
    %139 = vmatpush1.bf16.msra.mxu0 %v114
    %140 = vmatprep.subr.bf16.mxu0 0
    %141 = vmatpush2.bf16.msra.mxu0 0
    %142 = vmatprep.subr.bf16.mxu0 0
    %143 = vmatpush2.bf16.msra.mxu0 0
    %144 = vmatprep.subr.bf16.mxu0 0
    %145 = vmatpush2.bf16.msra.mxu0 0
    %146 = vmatprep.subr.bf16.mxu0 0
    %147 = vmatpush2.bf16.msra.mxu0 0
    %148 = vmatprep.subr.bf16.mxu0 0
    %149 = vmatpush2.bf16.msra.mxu0 0
    %150 = vmatprep.subr.bf16.mxu0 0
    %151 = vmatpush2.bf16.msra.mxu0 0
    %152 = vmatprep.subr.bf16.mxu0 0
    %153 = vmatpush2.bf16.msra.mxu0 0
    %154 = vmatprep.subr.bf16.mxu0 0
    %155 = vmatpush2.bf16.msra.mxu0 0
    %156 = vmatprep.mubr.bf16.mxu0 0
    %157 = vmatmul.mubr.bf16.gmra.mxu0 %v122
    %v158 = vpop.f32.mrf.mxu0
    %v159 = vadd.f32 %v92, %v158
    %v160 = vpop.f32.mrf.mxu0
    %v161 = vadd.f32 %v96, %v160
    %v162 = vpop.f32.mrf.mxu0
    %v163 = vpop.f32.mrf.mxu0
    %164 = vdwg.mxu0
    %165 = vmatprep.subr.bf16.mxu0 0
    %166 = vmatpush1.bf16.msra.mxu0 0
    %167 = vmatprep.subr.bf16.mxu0 0
    %168 = vmatpush1.bf16.msra.mxu0 0
    %169 = vmatprep.subr.bf16.mxu0 0
    %170 = vmatpush1.bf16.msra.mxu0 0
    %171 = vmatprep.subr.bf16.mxu0 0
    %172 = vmatpush1.bf16.msra.mxu0 0
    %173 = vmatprep.subr.bf16.mxu0 0
    %174 = vmatpush1.bf16.msra.mxu0 0
    %175 = vmatprep.subr.bf16.mxu0 0
    %176 = vmatpush1.bf16.msra.mxu0 0
    %177 = vmatprep.subr.bf16.mxu0 0
    %178 = vmatpush1.bf16.msra.mxu0 0
    %179 = vmatprep.subr.bf16.mxu0 0
    %180 = vmatpush1.bf16.msra.mxu0 %v116
    %181 = vmatprep.subr.bf16.mxu0 0
    %182 = vmatpush2.bf16.msra.mxu0 0
    %183 = vmatprep.subr.bf16.mxu0 0
    %184 = vmatpush2.bf16.msra.mxu0 0
    %185 = vmatprep.subr.bf16.mxu0 0
    %186 = vmatpush2.bf16.msra.mxu0 0
    %187 = vmatprep.subr.bf16.mxu0 0
    %188 = vmatpush2.bf16.msra.mxu0 0
    %189 = vmatprep.subr.bf16.mxu0 0
    %190 = vmatpush2.bf16.msra.mxu0 0
    %191 = vmatprep.subr.bf16.mxu0 0
    %192 = vmatpush2.bf16.msra.mxu0 0
    %193 = vmatprep.subr.bf16.mxu0 0
    %194 = vmatpush2.bf16.msra.mxu0 0
    %195 = vmatprep.subr.bf16.mxu0 0
    %196 = vmatpush2.bf16.msra.mxu0 0
    %197 = vmatprep.mubr.bf16.mxu0 0
    %198 = vmatmul.mubr.bf16.gmra.mxu0 %v122
    %v199 = vpop.f32.mrf.mxu0
    %v200 = vadd.f32 %v100, %v199
    %v201 = vpop.f32.mrf.mxu0
    %v202 = vpop.f32.mrf.mxu0
    %v203 = vpop.f32.mrf.mxu0
    %204 = vdwg.mxu0
    %v205 = vld [vmem:[#allocation8] sm:$0xff]
    %v206 = vld [vmem:[#allocation8 + $0x8] sm:$0xf]
    %v207 = vld [vmem:[#allocation8 + $0xc] sm:$0xff]
    %v208 = vld [vmem:[#allocation8 + $0x14] sm:$0xf]
    %v209 = vld [vmem:[#allocation8 + $0x18] sm:$0xff]
    %v210 = vld [vmem:[#allocation8 + $0x20] sm:$0xf]
    %v211 = vld [vmem:[#allocation8 + $0x24] sm:$0xff]
    %v212 = vld [vmem:[#allocation8 + $0x2c] sm:$0xf]
    %v213 = vld [vmem:[%s5] sm:$0x7]
    %v215 = vlaneseq
    %v216 = vshrl.u32 %v215, 7
    %v217 = vsub.s32 0, %v216
    %v218 = vrot.slane %v213, %v217
    %v219 = vlaneseq
    %v220 = vshrl.u32 %v219, 7
    %v221 = vsub.s32 1, %v220
    %v222 = vrot.slane %v213, %v221
    %v223 = vlaneseq
    %v224 = vshrl.u32 %v223, 7
    %v225 = vsub.s32 2, %v224
    %v226 = vrot.slane %v213, %v225
    %v238 = vunpack.c.l.b16 %v205
    %v239 = vunpack.c.h.b16 %v205
    %v240 = vunpack.c.l.b16 %v206
    %v241 = vunpack.c.l.b16 %v207
    %v242 = vunpack.c.h.b16 %v207
    %v243 = vunpack.c.l.b16 %v208
    %v244 = vunpack.c.l.b16 %v209
    %v245 = vunpack.c.h.b16 %v209
    %v246 = vunpack.c.l.b16 %v210
    %v247 = vunpack.c.l.b16 %v211
    %v248 = vunpack.c.h.b16 %v211
    %v249 = vunpack.c.l.b16 %v212
    %v250 = vpack.c.b16 %v241, %v238
    %v251 = vpack.c.b16 %v242, %v239
    %v252 = vpack.c.b16 %v243, %v240
    %v253 = vpack.c.b16 %v247, %v244
    %v254 = vpack.c.b16 %v248, %v245
    %v255 = vpack.c.b16 %v249, %v246
    %vm262 = vcmask 261120
    %v264 = vsel %vm262, %v82, 0
    %266 = vmatprep.subr.bf16.mxu0 0
    %267 = vmatpush1.bf16.msra.mxu0 0
    %268 = vmatprep.subr.bf16.mxu0 0
    %269 = vmatpush1.bf16.msra.mxu0 0
    %270 = vmatprep.subr.bf16.mxu0 0
    %271 = vmatpush1.bf16.msra.mxu0 0
    %272 = vmatprep.subr.bf16.mxu0 0
    %273 = vmatpush1.bf16.msra.mxu0 0
    %274 = vmatprep.subr.bf16.mxu0 0
    %275 = vmatpush1.bf16.msra.mxu0 0
    %276 = vmatprep.subr.bf16.mxu0 0
    %277 = vmatpush1.bf16.msra.mxu0 0
    %278 = vmatprep.subr.bf16.mxu0 %v254
    %279 = vmatpush1.bf16.msra.mxu0 %v253
    %280 = vmatprep.subr.bf16.mxu0 %v251
    %281 = vmatpush1.bf16.msra.mxu0 %v250
    %282 = vmatprep.subr.bf16.mxu0 0
    %283 = vmatpush2.bf16.msra.mxu0 0
    %284 = vmatprep.subr.bf16.mxu0 0
    %285 = vmatpush2.bf16.msra.mxu0 0
    %286 = vmatprep.subr.bf16.mxu0 0
    %287 = vmatpush2.bf16.msra.mxu0 0
    %288 = vmatprep.subr.bf16.mxu0 0
    %289 = vmatpush2.bf16.msra.mxu0 0
    %290 = vmatprep.subr.bf16.mxu0 0
    %291 = vmatpush2.bf16.msra.mxu0 0
    %292 = vmatprep.subr.bf16.mxu0 0
    %293 = vmatpush2.bf16.msra.mxu0 0
    %294 = vmatprep.subr.bf16.mxu0 0
    %295 = vmatpush2.bf16.msra.mxu0 0
    %296 = vmatprep.subr.bf16.mxu0 0
    %297 = vmatpush2.bf16.msra.mxu0 0
    %298 = vmatprep.mubr.bf16.mxu0 0
    %299 = vmatmul.mubr.bf16.gmra.mxu0 %v264
    %v300 = vpop.f32.mrf.mxu0
    %v301 = vadd.f32 %v218, %v300
    %v302 = vpop.f32.mrf.mxu0
    %v303 = vadd.f32 %v222, %v302
    %v304 = vpop.f32.mrf.mxu0
    %v305 = vpop.f32.mrf.mxu0
    %306 = vdwg.mxu0
    %307 = vmatprep.subr.bf16.mxu0 0
    %308 = vmatpush1.bf16.msra.mxu0 0
    %309 = vmatprep.subr.bf16.mxu0 0
    %310 = vmatpush1.bf16.msra.mxu0 0
    %311 = vmatprep.subr.bf16.mxu0 0
    %312 = vmatpush1.bf16.msra.mxu0 0
    %313 = vmatprep.subr.bf16.mxu0 0
    %314 = vmatpush1.bf16.msra.mxu0 0
    %315 = vmatprep.subr.bf16.mxu0 0
    %316 = vmatpush1.bf16.msra.mxu0 0
    %317 = vmatprep.subr.bf16.mxu0 0
    %318 = vmatpush1.bf16.msra.mxu0 0
    %319 = vmatprep.subr.bf16.mxu0 0
    %320 = vmatpush1.bf16.msra.mxu0 %v255
    %321 = vmatprep.subr.bf16.mxu0 0
    %322 = vmatpush1.bf16.msra.mxu0 %v252
    %323 = vmatprep.subr.bf16.mxu0 0
    %324 = vmatpush2.bf16.msra.mxu0 0
    %325 = vmatprep.subr.bf16.mxu0 0
    %326 = vmatpush2.bf16.msra.mxu0 0
    %327 = vmatprep.subr.bf16.mxu0 0
    %328 = vmatpush2.bf16.msra.mxu0 0
    %329 = vmatprep.subr.bf16.mxu0 0
    %330 = vmatpush2.bf16.msra.mxu0 0
    %331 = vmatprep.subr.bf16.mxu0 0
    %332 = vmatpush2.bf16.msra.mxu0 0
    %333 = vmatprep.subr.bf16.mxu0 0
    %334 = vmatpush2.bf16.msra.mxu0 0
    %335 = vmatprep.subr.bf16.mxu0 0
    %336 = vmatpush2.bf16.msra.mxu0 0
    %337 = vmatprep.subr.bf16.mxu0 0
    %338 = vmatpush2.bf16.msra.mxu0 0
    %339 = vmatprep.mubr.bf16.mxu0 0
    %340 = vmatmul.mubr.bf16.gmra.mxu0 %v264
    %v341 = vpop.f32.mrf.mxu0
    %v342 = vadd.f32 %v226, %v341
    %v343 = vpop.f32.mrf.mxu0
    %v344 = vpop.f32.mrf.mxu0
    %v345 = vpop.f32.mrf.mxu0
    %346 = vdwg.mxu0
    %v347 = vadd.f32 %v159, %v301
    %v348 = vxor.u32 %v347, 2147483648
    %v349 = vmul.f32 %v348, 1.442695
    %v350 = vpow.pop %v349
    %v351 = vadd.f32 %v350, 1.0
    %v352 = vrcp.pop %v351
    %v353 = vmul.f32 1.0, %v352
    %v354 = vadd.f32 %v161, %v303
    %v355 = vxor.u32 %v354, 2147483648
    %v356 = vmul.f32 %v355, 1.442695
    %v357 = vpow.pop %v356
    %v358 = vadd.f32 %v357, 1.0
    %v359 = vrcp.pop %v358
    %v360 = vmul.f32 1.0, %v359
    %v361 = vmul.f32 %v353, %v342
    %v362 = vadd.f32 %v200, %v361
    %v363 = vtanh.pop %v362
    %v364 = vsub.f32 1.0, %v360
    %v365 = vmul.f32 %v364, %v363
    %v366 = vmul.f32 %v360, %v79
    %v367 = vadd.f32 %v365, %v366
    %v368 = vmax.f32 %v367, 0.0
    %369 = vst.msk [vmem:[#allocation10] sm:$0xff] %vm262, %v368
    %370 = vst.msk [vmem:[#allocation11] sm:$0xff] %vm262, %v367
    // Predicated region
    $region42: #{encoder_rnn_forward.1} parent=1 // pred_check
      _
    $region43: #{encoder_rnn_forward.1} parent=1 // pred_check_branch
      %372 = sbr.rel (0) target = $region45
    $region44: #{encoder_rnn_forward.1} parent=1 // pred_region
      %s374 = ssub.s32 128, 128
      %375 = vsyncadd [#allocation4], %s374
      %s377 = sshll.u32 [#allocation10], 4
      %s378 = int_to_ptr.vmem [resolvable:$true] %s377
      %380 = dma.vmem_to_hbm [thread:$0]  %s378, 128, %s6, [#allocation4]
    $region45: #{encoder_rnn_forward.1} parent=1 // pred_fallthru
      _
    // Predicated region
    $region46: #{encoder_rnn_forward.1} parent=1 // pred_check
      _
    $region47: #{encoder_rnn_forward.1} parent=1 // pred_check_branch
      %382 = sbr.rel (0) target = $region49
    $region48: #{encoder_rnn_forward.1} parent=1 // pred_region
      %s384 = ssub.s32 128, 128
      %385 = vsyncadd [#allocation12], %s384
      %s387 = sshll.u32 [#allocation11], 4
      %s388 = int_to_ptr.vmem [resolvable:$true] %s387
      %390 = dma.vmem_to_hbm [thread:$0]  %s388, 128, %s7, [#allocation12]
    $region49: #{encoder_rnn_forward.1} parent=1 // pred_fallthru
      _
    // Predicated region
    $region50: #{encoder_rnn_forward.1} parent=1 // pred_check
      _
    $region51: #{encoder_rnn_forward.1} parent=1 // pred_check_branch
      %392 = sbr.rel (0) target = $region53
    $region52: #{encoder_rnn_forward.1} parent=1 // pred_region
      %393 = dma.done [#allocation4], 128
    $region53: #{encoder_rnn_forward.1} parent=1 // pred_fallthru
      _
    // Predicated region
    $region54: #{encoder_rnn_forward.1} parent=1 // pred_check
      _
    $region55: #{encoder_rnn_forward.1} parent=1 // pred_check_branch
      %395 = sbr.rel (0) target = $region57
    $region56: #{encoder_rnn_forward.1} parent=1 // pred_region
      %396 = dma.done [#allocation12], 128
    $region57: #{encoder_rnn_forward.1} parent=1 // pred_fallthru
      _
    %397 = vsyncpa [#allocation3], 1
    %398 = vsyncpa [#allocation6], 1
    %399 = vsyncpa [#allocation9], 1
    %400 = vsyncpa [#allocation4], 1
    %401 = vsyncpa [#allocation12], 1

</llo_original>
